<compile_context>
chip_gen: v5e
topology: v5e:2x2
jax: 0.10.0
libtpu: 0.0.40
codegen_flags: <defaults>
</compile_context>

<pallas_src>
import jax
import jax.numpy as jnp
from jax.experimental import pallas as pl
from jax.experimental.pallas import tpu as pltpu

_LANES = 128
_MAX_BLOCK_ROWS = 4096    # (4096, 128) f32 = 2 MiB block; 8 MiB pipeline buffers
_MIN_SPLIT_ROWS = 2048    # below ~1 MiB a single block is fine (no split)


def _sigmoid_mul_kernel(x_ref, o_ref):
    x = x_ref[...]
    # sigmoid(x) == 0.5 * (tanh(0.5 * x) + 1)  -> single EUP op per sigmoid
    v1 = 0.5 * (jnp.tanh(0.5 * x) + 1.0)
    v2 = 0.5 * (jnp.tanh(0.5 * v1) + 1.0)
    o_ref[...] = (v1 * v2).astype(o_ref.dtype)


def _choose_block_rows(rows):
    """Pick a block height: big enough to amortize per-step overhead, small
    enough for scoped VMEM, and yielding >=2 (preferably even) steps for
    pipelining / v7x megacore when the array is large."""
    if rows <= _MIN_SPLIT_ROWS:
        return rows  # one full-extent block; (8,128) rule satisfied trivially
    # Even number of steps >= 2, each block capped at ~2 MiB.
    target_steps = max(2, 2 * pl.cdiv(rows, 2 * _MAX_BLOCK_ROWS))
    block = pl.cdiv(rows, target_steps)
    block = max(8, ((block + 7) // 8) * 8)  # sublane multiple of 8
    return min(block, rows)


def _run_kernel_2d(x2d):
    rows, _ = x2d.shape
    block_rows = _choose_block_rows(rows)
    grid = (pl.cdiv(rows, block_rows),)
    n_elems = rows * _LANES
    itemsize = jnp.dtype(x2d.dtype).itemsize
    cost = pl.CostEstimate(
        flops=7 * n_elems,              # 3 VPU ops per sigmoid + final mul
        transcendentals=2 * n_elems,    # 2 tanh per element
        bytes_accessed=2 * n_elems * itemsize,
    )
    return pl.pallas_call(
        _sigmoid_mul_kernel,
        out_shape=jax.ShapeDtypeStruct((rows, _LANES), x2d.dtype),
        grid=grid,
        in_specs=[pl.BlockSpec((block_rows, _LANES), lambda i: (i, 0))],
        out_specs=pl.BlockSpec((block_rows, _LANES), lambda i: (i, 0)),
        compiler_params=pltpu.CompilerParams(
            dimension_semantics=("parallel",),
        ),
        cost_estimate=cost,
    )(x2d)


def model_forward(x1):
    """x1: (N, C, H, W) float32 -> same shape/dtype, matching the torch Model."""
    orig_shape = x1.shape
    total = x1.size

    if total % _LANES == 0:
        # Zero-copy lane-dense layout: row-major reshape, no pad, no slice.
        x2d = x1.reshape(total // _LANES, _LANES)
        out2d = _run_kernel_2d(x2d)
        return out2d.reshape(orig_shape)

    # Rare unaligned fallback: pad to a lane multiple, run, slice back.
    # (Costs extra HBM passes; only hit when N*C*H*W % 128 != 0.)
    flat = x1.reshape(-1)
    pad = (-total) % _LANES
    flat = jnp.pad(flat, (0, pad))
    out2d = _run_kernel_2d(flat.reshape(-1, _LANES))
    return out2d.reshape(-1)[:total].reshape(orig_shape)


if __name__ == "__main__":
    key = jax.random.PRNGKey(0)
    # Small input consistent with the module's elementwise forward
    # (original spec uses (1, 1, 64, 64)); total is a multiple of 128 so the
    # zero-copy path is exercised.
    x1 = jax.random.normal(key, (2, 4, 64, 64), dtype=jnp.float32)

    out = jax.block_until_ready(model_forward(x1))

    # Reference in plain JAX (exact sigmoid); tanh-based sigmoid differs only
    # at the ULP level.
    v1 = jax.nn.sigmoid(x1)
    ref = v1 * jax.nn.sigmoid(v1)
    assert out.shape == x1.shape
    assert out.dtype == x1.dtype
    assert jnp.allclose(out, ref, atol=1e-5, rtol=1e-5)

    print("KERNEL_OK")
</pallas_src>

<mosaic_0001>
module attributes {stable_mosaic.version = 11 : i64} {
  func.func @_sigmoid_mul_kernel(%arg0: i32, %arg1: memref<256x128xf32, #tpu.memory_space<vmem>>, %arg2: memref<256x128xf32, #tpu.memory_space<vmem>>) attributes {dimension_semantics = [#tpu.dimension_semantics<parallel>], iteration_bounds = array<i64: 1>, scalar_prefetch = 0 : i64, scratch_operands = 0 : i64, tpu.core_type = #tpu.core_type<tc>, window_params = [{transform_indices = @transform_0, window_bounds = array<i64: 256, 128>}, {transform_indices = @transform_1, window_bounds = array<i64: 256, 128>}]} {
    %c0 = arith.constant 0 : index
    %c0_0 = arith.constant 0 : index
    %0 = vector.load %arg1[%c0, %c0_0] : memref<256x128xf32, #tpu.memory_space<vmem>>, vector<256x128xf32>
    %cst = arith.constant 5.000000e-01 : f32
    %1 = vector.broadcast %cst : f32 to vector<256x128xf32>
    %2 = arith.mulf %1, %0 : vector<256x128xf32>
    %3 = math.tanh %2 : vector<256x128xf32>
    %cst_1 = arith.constant 1.000000e+00 : f32
    %4 = vector.broadcast %cst_1 : f32 to vector<256x128xf32>
    %5 = arith.addf %3, %4 : vector<256x128xf32>
    %cst_2 = arith.constant 5.000000e-01 : f32
    %6 = vector.broadcast %cst_2 : f32 to vector<256x128xf32>
    %7 = arith.mulf %6, %5 : vector<256x128xf32>
    %cst_3 = arith.constant 5.000000e-01 : f32
    %8 = vector.broadcast %cst_3 : f32 to vector<256x128xf32>
    %9 = arith.mulf %8, %7 : vector<256x128xf32>
    %10 = math.tanh %9 : vector<256x128xf32>
    %cst_4 = arith.constant 1.000000e+00 : f32
    %11 = vector.broadcast %cst_4 : f32 to vector<256x128xf32>
    %12 = arith.addf %10, %11 : vector<256x128xf32>
    %cst_5 = arith.constant 5.000000e-01 : f32
    %13 = vector.broadcast %cst_5 : f32 to vector<256x128xf32>
    %14 = arith.mulf %13, %12 : vector<256x128xf32>
    %15 = arith.mulf %7, %14 : vector<256x128xf32>
    %c0_6 = arith.constant 0 : index
    %c0_7 = arith.constant 0 : index
    %16 = vector.load %arg2[%c0_6, %c0_7] : memref<256x128xf32, #tpu.memory_space<vmem>>, vector<256x128xf32>
    tpu.vector_store %arg2[%c0_6, %c0_7], %15 {strides = array<i32>} : memref<256x128xf32, #tpu.memory_space<vmem>>, vector<256x128xf32>,
    return
  }
  func.func @transform_0(%arg0: i32) -> (i32, i32) {
    %c0_i32 = arith.constant 0 : i32
    %c0_i32_0 = arith.constant 0 : i32
    return %arg0, %c0_i32 : i32, i32
  }
  func.func @transform_1(%arg0: i32) -> (i32, i32) {
    %c0_i32 = arith.constant 0 : i32
    %c0_i32_0 = arith.constant 0 : i32
    return %arg0, %c0_i32 : i32, i32
  }
}

</mosaic_0001>

<llo_original>
// kernel: tpu_custom_call.1
$region0: #{tpu_custom_call.1}
  #allocation0 [shape = 'u32[]', space=smem, size = 0x4, offset = 0x4, fixed_abs, tag = 'smem constant byte address 0x4 - core index']
  #allocation1 [shape = 'u32[72,128]{1,0:T(1,128)}', space=vmem, size = 0x9000, scoped, tag = 'internal scratch']
  %s0 = inlined_call_operand.hbm [shape: f32[256,128], index: 0, kind: input, shape index: {}]
  %s1 = inlined_call_operand.hbm [shape: f32[256,128], index: 1, kind: output, shape index: {}]
  %s2 = sld [smem:[#allocation0]]
  $region18: #{tpu_custom_call.1} parent=0
    _
  %s4 = ssub.s32 1, %s2
  %s5 = scalar_select 0, %s4, %s2
  $region1: #{tpu_custom_call.1} parent=0
    #allocation2 [shape = 'u8[131072]{0}', space=vmem, size = 0x20000, scoped, tag = 'input window, operand 0, single buffered']
    #allocation3 [shape = 's32[1]{0}', space=sflag, size = 0x4, scoped, tag = 'scoped memory for tpu_custom_call.1']
    #allocation4 [shape = 's32[1]{0}', space=sflag, size = 0x4, scoped, tag = 'scoped memory for tpu_custom_call.1']
    #allocation5 [shape = 'u8[131072]{0}', space=vmem, size = 0x20000, scoped, tag = 'output window, operand 0, single buffered']
    %6 = vsyncpa [#allocation3], 0
    %7 = vsyncpa [#allocation4], 0
    // Predicated region
    $region2: #{tpu_custom_call.1} parent=1 // pred_check
      _
    $region3: #{tpu_custom_call.1} parent=1 // pred_check_branch
      %9 = sbr.rel (0) target = $region5
    $region4: #{tpu_custom_call.1} parent=1 // pred_region
      %11 = vsyncadd [#allocation3], 0
      %s12 = sshll.u32 %s0, 4
      %s13 = int_to_ptr.hbm [resolvable:$true] %s12
      %s14 = sshll.u32 [#allocation2], 4
      %s15 = int_to_ptr.vmem [resolvable:$true] %s14
      %20 = dma.hbm_to_vmem [thread:$0]  %s13, 4096, %s15, [#allocation3], 128, 128, 8
    $region5: #{tpu_custom_call.1} parent=1 // pred_fallthru
      _
    // Predicated region
    $region6: #{tpu_custom_call.1} parent=1 // pred_check
      _
    $region7: #{tpu_custom_call.1} parent=1 // pred_check_branch
      %22 = sbr.rel (0) target = $region9
    $region8: #{tpu_custom_call.1} parent=1 // pred_region
      %24 = dma.done [#allocation3], 4096
    $region9: #{tpu_custom_call.1} parent=1 // pred_fallthru
      _
    %v25 = vld [vmem:[#allocation2] sm:$0xff]
    %v26 = vld [vmem:[#allocation2 + $0x8] sm:$0xff]
    %v27 = vld [vmem:[#allocation2 + $0x10] sm:$0xff]
    %v28 = vld [vmem:[#allocation2 + $0x18] sm:$0xff]
    %v29 = vld [vmem:[#allocation2 + $0x20] sm:$0xff]
    %v30 = vld [vmem:[#allocation2 + $0x28] sm:$0xff]
    %v31 = vld [vmem:[#allocation2 + $0x30] sm:$0xff]
    %v32 = vld [vmem:[#allocation2 + $0x38] sm:$0xff]
    %v33 = vld [vmem:[#allocation2 + $0x40] sm:$0xff]
    %v34 = vld [vmem:[#allocation2 + $0x48] sm:$0xff]
    %v35 = vld [vmem:[#allocation2 + $0x50] sm:$0xff]
    %v36 = vld [vmem:[#allocation2 + $0x58] sm:$0xff]
    %v37 = vld [vmem:[#allocation2 + $0x60] sm:$0xff]
    %v38 = vld [vmem:[#allocation2 + $0x68] sm:$0xff]
    %v39 = vld [vmem:[#allocation2 + $0x70] sm:$0xff]
    %v40 = vld [vmem:[#allocation2 + $0x78] sm:$0xff]
    %v41 = vld [vmem:[#allocation2 + $0x80] sm:$0xff]
    %v42 = vld [vmem:[#allocation2 + $0x88] sm:$0xff]
    %v43 = vld [vmem:[#allocation2 + $0x90] sm:$0xff]
    %v44 = vld [vmem:[#allocation2 + $0x98] sm:$0xff]
    %v45 = vld [vmem:[#allocation2 + $0xa0] sm:$0xff]
    %v46 = vld [vmem:[#allocation2 + $0xa8] sm:$0xff]
    %v47 = vld [vmem:[#allocation2 + $0xb0] sm:$0xff]
    %v48 = vld [vmem:[#allocation2 + $0xb8] sm:$0xff]
    %v49 = vld [vmem:[#allocation2 + $0xc0] sm:$0xff]
    %v50 = vld [vmem:[#allocation2 + $0xc8] sm:$0xff]
    %v51 = vld [vmem:[#allocation2 + $0xd0] sm:$0xff]
    %v52 = vld [vmem:[#allocation2 + $0xd8] sm:$0xff]
    %v53 = vld [vmem:[#allocation2 + $0xe0] sm:$0xff]
    %v54 = vld [vmem:[#allocation2 + $0xe8] sm:$0xff]
    %v55 = vld [vmem:[#allocation2 + $0xf0] sm:$0xff]
    %v56 = vld [vmem:[#allocation2 + $0xf8] sm:$0xff]
    %v57 = vmul.f32 %v25, 0.5
    %v58 = vmul.f32 %v26, 0.5
    %v59 = vmul.f32 %v27, 0.5
    %v60 = vmul.f32 %v28, 0.5
    %v61 = vmul.f32 %v29, 0.5
    %v62 = vmul.f32 %v30, 0.5
    %v63 = vmul.f32 %v31, 0.5
    %v64 = vmul.f32 %v32, 0.5
    %v65 = vmul.f32 %v33, 0.5
    %v66 = vmul.f32 %v34, 0.5
    %v67 = vmul.f32 %v35, 0.5
    %v68 = vmul.f32 %v36, 0.5
    %v69 = vmul.f32 %v37, 0.5
    %v70 = vmul.f32 %v38, 0.5
    %v71 = vmul.f32 %v39, 0.5
    %v72 = vmul.f32 %v40, 0.5
    %v73 = vmul.f32 %v41, 0.5
    %v74 = vmul.f32 %v42, 0.5
    %v75 = vmul.f32 %v43, 0.5
    %v76 = vmul.f32 %v44, 0.5
    %v77 = vmul.f32 %v45, 0.5
    %v78 = vmul.f32 %v46, 0.5
    %v79 = vmul.f32 %v47, 0.5
    %v80 = vmul.f32 %v48, 0.5
    %v81 = vmul.f32 %v49, 0.5
    %v82 = vmul.f32 %v50, 0.5
    %v83 = vmul.f32 %v51, 0.5
    %v84 = vmul.f32 %v52, 0.5
    %v85 = vmul.f32 %v53, 0.5
    %v86 = vmul.f32 %v54, 0.5
    %v87 = vmul.f32 %v55, 0.5
    %v88 = vmul.f32 %v56, 0.5
    %v89 = vtanh.pop %v57
    %v90 = vtanh.pop %v58
    %v91 = vtanh.pop %v59
    %v92 = vtanh.pop %v60
    %v93 = vtanh.pop %v61
    %v94 = vtanh.pop %v62
    %v95 = vtanh.pop %v63
    %v96 = vtanh.pop %v64
    %v97 = vtanh.pop %v65
    %v98 = vtanh.pop %v66
    %v99 = vtanh.pop %v67
    %v100 = vtanh.pop %v68
    %v101 = vtanh.pop %v69
    %v102 = vtanh.pop %v70
    %v103 = vtanh.pop %v71
    %v104 = vtanh.pop %v72
    %v105 = vtanh.pop %v73
    %v106 = vtanh.pop %v74
    %v107 = vtanh.pop %v75
    %v108 = vtanh.pop %v76
    %v109 = vtanh.pop %v77
    %v110 = vtanh.pop %v78
    %v111 = vtanh.pop %v79
    %v112 = vtanh.pop %v80
    %v113 = vtanh.pop %v81
    %v114 = vtanh.pop %v82
    %v115 = vtanh.pop %v83
    %v116 = vtanh.pop %v84
    %v117 = vtanh.pop %v85
    %v118 = vtanh.pop %v86
    %v119 = vtanh.pop %v87
    %v120 = vtanh.pop %v88
    %v121 = vadd.f32 %v89, 1.0
    %v122 = vadd.f32 %v90, 1.0
    %v123 = vadd.f32 %v91, 1.0
    %v124 = vadd.f32 %v92, 1.0
    %v125 = vadd.f32 %v93, 1.0
    %v126 = vadd.f32 %v94, 1.0
    %v127 = vadd.f32 %v95, 1.0
    %v128 = vadd.f32 %v96, 1.0
    %v129 = vadd.f32 %v97, 1.0
    %v130 = vadd.f32 %v98, 1.0
    %v131 = vadd.f32 %v99, 1.0
    %v132 = vadd.f32 %v100, 1.0
    %v133 = vadd.f32 %v101, 1.0
    %v134 = vadd.f32 %v102, 1.0
    %v135 = vadd.f32 %v103, 1.0
    %v136 = vadd.f32 %v104, 1.0
    %v137 = vadd.f32 %v105, 1.0
    %v138 = vadd.f32 %v106, 1.0
    %v139 = vadd.f32 %v107, 1.0
    %v140 = vadd.f32 %v108, 1.0
    %v141 = vadd.f32 %v109, 1.0
    %v142 = vadd.f32 %v110, 1.0
    %v143 = vadd.f32 %v111, 1.0
    %v144 = vadd.f32 %v112, 1.0
    %v145 = vadd.f32 %v113, 1.0
    %v146 = vadd.f32 %v114, 1.0
    %v147 = vadd.f32 %v115, 1.0
    %v148 = vadd.f32 %v116, 1.0
    %v149 = vadd.f32 %v117, 1.0
    %v150 = vadd.f32 %v118, 1.0
    %v151 = vadd.f32 %v119, 1.0
    %v152 = vadd.f32 %v120, 1.0
    %v153 = vmul.f32 %v121, 0.5
    %v154 = vmul.f32 %v122, 0.5
    %v155 = vmul.f32 %v123, 0.5
    %v156 = vmul.f32 %v124, 0.5
    %v157 = vmul.f32 %v125, 0.5
    %v158 = vmul.f32 %v126, 0.5
    %v159 = vmul.f32 %v127, 0.5
    %v160 = vmul.f32 %v128, 0.5
    %v161 = vmul.f32 %v129, 0.5
    %v162 = vmul.f32 %v130, 0.5
    %v163 = vmul.f32 %v131, 0.5
    %v164 = vmul.f32 %v132, 0.5
    %v165 = vmul.f32 %v133, 0.5
    %v166 = vmul.f32 %v134, 0.5
    %v167 = vmul.f32 %v135, 0.5
    %v168 = vmul.f32 %v136, 0.5
    %v169 = vmul.f32 %v137, 0.5
    %v170 = vmul.f32 %v138, 0.5
    %v171 = vmul.f32 %v139, 0.5
    %v172 = vmul.f32 %v140, 0.5
    %v173 = vmul.f32 %v141, 0.5
    %v174 = vmul.f32 %v142, 0.5
    %v175 = vmul.f32 %v143, 0.5
    %v176 = vmul.f32 %v144, 0.5
    %v177 = vmul.f32 %v145, 0.5
    %v178 = vmul.f32 %v146, 0.5
    %v179 = vmul.f32 %v147, 0.5
    %v180 = vmul.f32 %v148, 0.5
    %v181 = vmul.f32 %v149, 0.5
    %v182 = vmul.f32 %v150, 0.5
    %v183 = vmul.f32 %v151, 0.5
    %v184 = vmul.f32 %v152, 0.5
    %v185 = vmul.f32 %v153, 0.5
    %v186 = vmul.f32 %v154, 0.5
    %v187 = vmul.f32 %v155, 0.5
    %v188 = vmul.f32 %v156, 0.5
    %v189 = vmul.f32 %v157, 0.5
    %v190 = vmul.f32 %v158, 0.5
    %v191 = vmul.f32 %v159, 0.5
    %v192 = vmul.f32 %v160, 0.5
    %v193 = vmul.f32 %v161, 0.5
    %v194 = vmul.f32 %v162, 0.5
    %v195 = vmul.f32 %v163, 0.5
    %v196 = vmul.f32 %v164, 0.5
    %v197 = vmul.f32 %v165, 0.5
    %v198 = vmul.f32 %v166, 0.5
    %v199 = vmul.f32 %v167, 0.5
    %v200 = vmul.f32 %v168, 0.5
    %v201 = vmul.f32 %v169, 0.5
    %v202 = vmul.f32 %v170, 0.5
    %v203 = vmul.f32 %v171, 0.5
    %v204 = vmul.f32 %v172, 0.5
    %v205 = vmul.f32 %v173, 0.5
    %v206 = vmul.f32 %v174, 0.5
    %v207 = vmul.f32 %v175, 0.5
    %v208 = vmul.f32 %v176, 0.5
    %v209 = vmul.f32 %v177, 0.5
    %v210 = vmul.f32 %v178, 0.5
    %v211 = vmul.f32 %v179, 0.5
    %v212 = vmul.f32 %v180, 0.5
    %v213 = vmul.f32 %v181, 0.5
    %v214 = vmul.f32 %v182, 0.5
    %v215 = vmul.f32 %v183, 0.5
    %v216 = vmul.f32 %v184, 0.5
    %v217 = vtanh.pop %v185
    %v218 = vtanh.pop %v186
    %v219 = vtanh.pop %v187
    %v220 = vtanh.pop %v188
    %v221 = vtanh.pop %v189
    %v222 = vtanh.pop %v190
    %v223 = vtanh.pop %v191
    %v224 = vtanh.pop %v192
    %v225 = vtanh.pop %v193
    %v226 = vtanh.pop %v194
    %v227 = vtanh.pop %v195
    %v228 = vtanh.pop %v196
    %v229 = vtanh.pop %v197
    %v230 = vtanh.pop %v198
    %v231 = vtanh.pop %v199
    %v232 = vtanh.pop %v200
    %v233 = vtanh.pop %v201
    %v234 = vtanh.pop %v202
    %v235 = vtanh.pop %v203
    %v236 = vtanh.pop %v204
    %v237 = vtanh.pop %v205
    %v238 = vtanh.pop %v206
    %v239 = vtanh.pop %v207
    %v240 = vtanh.pop %v208
    %v241 = vtanh.pop %v209
    %v242 = vtanh.pop %v210
    %v243 = vtanh.pop %v211
    %v244 = vtanh.pop %v212
    %v245 = vtanh.pop %v213
    %v246 = vtanh.pop %v214
    %v247 = vtanh.pop %v215
    %v248 = vtanh.pop %v216
    %v249 = vadd.f32 %v217, 1.0
    %v250 = vadd.f32 %v218, 1.0
    %v251 = vadd.f32 %v219, 1.0
    %v252 = vadd.f32 %v220, 1.0
    %v253 = vadd.f32 %v221, 1.0
    %v254 = vadd.f32 %v222, 1.0
    %v255 = vadd.f32 %v223, 1.0
    %v256 = vadd.f32 %v224, 1.0
    %v257 = vadd.f32 %v225, 1.0
    %v258 = vadd.f32 %v226, 1.0
    %v259 = vadd.f32 %v227, 1.0
    %v260 = vadd.f32 %v228, 1.0
    %v261 = vadd.f32 %v229, 1.0
    %v262 = vadd.f32 %v230, 1.0
    %v263 = vadd.f32 %v231, 1.0
    %v264 = vadd.f32 %v232, 1.0
    %v265 = vadd.f32 %v233, 1.0
    %v266 = vadd.f32 %v234, 1.0
    %v267 = vadd.f32 %v235, 1.0
    %v268 = vadd.f32 %v236, 1.0
    %v269 = vadd.f32 %v237, 1.0
    %v270 = vadd.f32 %v238, 1.0
    %v271 = vadd.f32 %v239, 1.0
    %v272 = vadd.f32 %v240, 1.0
    %v273 = vadd.f32 %v241, 1.0
    %v274 = vadd.f32 %v242, 1.0
    %v275 = vadd.f32 %v243, 1.0
    %v276 = vadd.f32 %v244, 1.0
    %v277 = vadd.f32 %v245, 1.0
    %v278 = vadd.f32 %v246, 1.0
    %v279 = vadd.f32 %v247, 1.0
    %v280 = vadd.f32 %v248, 1.0
    %v281 = vmul.f32 %v249, 0.5
    %v282 = vmul.f32 %v250, 0.5
    %v283 = vmul.f32 %v251, 0.5
    %v284 = vmul.f32 %v252, 0.5
    %v285 = vmul.f32 %v253, 0.5
    %v286 = vmul.f32 %v254, 0.5
    %v287 = vmul.f32 %v255, 0.5
    %v288 = vmul.f32 %v256, 0.5
    %v289 = vmul.f32 %v257, 0.5
    %v290 = vmul.f32 %v258, 0.5
    %v291 = vmul.f32 %v259, 0.5
    %v292 = vmul.f32 %v260, 0.5
    %v293 = vmul.f32 %v261, 0.5
    %v294 = vmul.f32 %v262, 0.5
    %v295 = vmul.f32 %v263, 0.5
    %v296 = vmul.f32 %v264, 0.5
    %v297 = vmul.f32 %v265, 0.5
    %v298 = vmul.f32 %v266, 0.5
    %v299 = vmul.f32 %v267, 0.5
    %v300 = vmul.f32 %v268, 0.5
    %v301 = vmul.f32 %v269, 0.5
    %v302 = vmul.f32 %v270, 0.5
    %v303 = vmul.f32 %v271, 0.5
    %v304 = vmul.f32 %v272, 0.5
    %v305 = vmul.f32 %v273, 0.5
    %v306 = vmul.f32 %v274, 0.5
    %v307 = vmul.f32 %v275, 0.5
    %v308 = vmul.f32 %v276, 0.5
    %v309 = vmul.f32 %v277, 0.5
    %v310 = vmul.f32 %v278, 0.5
    %v311 = vmul.f32 %v279, 0.5
    %v312 = vmul.f32 %v280, 0.5
    %v313 = vmul.f32 %v153, %v281
    %v314 = vmul.f32 %v154, %v282
    %v315 = vmul.f32 %v155, %v283
    %v316 = vmul.f32 %v156, %v284
    %v317 = vmul.f32 %v157, %v285
    %v318 = vmul.f32 %v158, %v286
    %v319 = vmul.f32 %v159, %v287
    %v320 = vmul.f32 %v160, %v288
    %v321 = vmul.f32 %v161, %v289
    %v322 = vmul.f32 %v162, %v290
    %v323 = vmul.f32 %v163, %v291
    %v324 = vmul.f32 %v164, %v292
    %v325 = vmul.f32 %v165, %v293
    %v326 = vmul.f32 %v166, %v294
    %v327 = vmul.f32 %v167, %v295
    %v328 = vmul.f32 %v168, %v296
    %v329 = vmul.f32 %v169, %v297
    %v330 = vmul.f32 %v170, %v298
    %v331 = vmul.f32 %v171, %v299
    %v332 = vmul.f32 %v172, %v300
    %v333 = vmul.f32 %v173, %v301
    %v334 = vmul.f32 %v174, %v302
    %v335 = vmul.f32 %v175, %v303
    %v336 = vmul.f32 %v176, %v304
    %v337 = vmul.f32 %v177, %v305
    %v338 = vmul.f32 %v178, %v306
    %v339 = vmul.f32 %v179, %v307
    %v340 = vmul.f32 %v180, %v308
    %v341 = vmul.f32 %v181, %v309
    %v342 = vmul.f32 %v182, %v310
    %v343 = vmul.f32 %v183, %v311
    %v344 = vmul.f32 %v184, %v312
    %345 = vst [vmem:[#allocation5] sm:$0xff] %v313
    %346 = vst [vmem:[#allocation5 + $0x8] sm:$0xff] %v314
    %347 = vst [vmem:[#allocation5 + $0x10] sm:$0xff] %v315
    %348 = vst [vmem:[#allocation5 + $0x18] sm:$0xff] %v316
    %349 = vst [vmem:[#allocation5 + $0x20] sm:$0xff] %v317
    %350 = vst [vmem:[#allocation5 + $0x28] sm:$0xff] %v318
    %351 = vst [vmem:[#allocation5 + $0x30] sm:$0xff] %v319
    %352 = vst [vmem:[#allocation5 + $0x38] sm:$0xff] %v320
    %353 = vst [vmem:[#allocation5 + $0x40] sm:$0xff] %v321
    %354 = vst [vmem:[#allocation5 + $0x48] sm:$0xff] %v322
    %355 = vst [vmem:[#allocation5 + $0x50] sm:$0xff] %v323
    %356 = vst [vmem:[#allocation5 + $0x58] sm:$0xff] %v324
    %357 = vst [vmem:[#allocation5 + $0x60] sm:$0xff] %v325
    %358 = vst [vmem:[#allocation5 + $0x68] sm:$0xff] %v326
    %359 = vst [vmem:[#allocation5 + $0x70] sm:$0xff] %v327
    %360 = vst [vmem:[#allocation5 + $0x78] sm:$0xff] %v328
    %361 = vst [vmem:[#allocation5 + $0x80] sm:$0xff] %v329
    %362 = vst [vmem:[#allocation5 + $0x88] sm:$0xff] %v330
    %363 = vst [vmem:[#allocation5 + $0x90] sm:$0xff] %v331
    %364 = vst [vmem:[#allocation5 + $0x98] sm:$0xff] %v332
    %365 = vst [vmem:[#allocation5 + $0xa0] sm:$0xff] %v333
    %366 = vst [vmem:[#allocation5 + $0xa8] sm:$0xff] %v334
    %367 = vst [vmem:[#allocation5 + $0xb0] sm:$0xff] %v335
    %368 = vst [vmem:[#allocation5 + $0xb8] sm:$0xff] %v336
    %369 = vst [vmem:[#allocation5 + $0xc0] sm:$0xff] %v337
    %370 = vst [vmem:[#allocation5 + $0xc8] sm:$0xff] %v338
    %371 = vst [vmem:[#allocation5 + $0xd0] sm:$0xff] %v339
    %372 = vst [vmem:[#allocation5 + $0xd8] sm:$0xff] %v340
    %373 = vst [vmem:[#allocation5 + $0xe0] sm:$0xff] %v341
    %374 = vst [vmem:[#allocation5 + $0xe8] sm:$0xff] %v342
    %375 = vst [vmem:[#allocation5 + $0xf0] sm:$0xff] %v343
    %376 = vst [vmem:[#allocation5 + $0xf8] sm:$0xff] %v344
    // Predicated region
    $region10: #{tpu_custom_call.1} parent=1 // pred_check
      _
    $region11: #{tpu_custom_call.1} parent=1 // pred_check_branch
      %378 = sbr.rel (0) target = $region13
    $region12: #{tpu_custom_call.1} parent=1 // pred_region
      %380 = vsyncadd [#allocation4], 0
      %s381 = sshll.u32 [#allocation5], 4
      %s382 = int_to_ptr.vmem [resolvable:$true] %s381
      %s383 = sshll.u32 %s1, 4
      %s384 = int_to_ptr.hbm [resolvable:$true] %s383
      %389 = dma.vmem_to_hbm [thread:$0]  %s382, 4096, %s384, [#allocation4], 128, 128, 8
    $region13: #{tpu_custom_call.1} parent=1 // pred_fallthru
      _
    // Predicated region
    $region14: #{tpu_custom_call.1} parent=1 // pred_check
      _
    $region15: #{tpu_custom_call.1} parent=1 // pred_check_branch
      %391 = sbr.rel (0) target = $region17
    $region16: #{tpu_custom_call.1} parent=1 // pred_region
      %393 = dma.done [#allocation4], 4096
    $region17: #{tpu_custom_call.1} parent=1 // pred_fallthru
      _
    %394 = vsyncpa [#allocation3], 1
    %395 = vsyncpa [#allocation4], 1

</llo_original>
